<compile_context>
chip_gen: v7x
topology: tpu7x:2x2x1
jax: 0.10.0
libtpu: 0.0.40
codegen_flags: <defaults>
</compile_context>

<pallas_src>
import functools
import math

import jax
import jax.numpy as jnp
from jax.experimental import pallas as pl
from jax.experimental.pallas import tpu as pltpu


# ----------------------------- Fused Pallas kernel --------------------------

_NEG_BIG = -1e30  # finite "-inf" for masking padded lanes in log_softmax


def _appnp_fused_kernel(x_ref, w1_ref, b1_ref, w2_ref, b2_ref, a_ref,
                        o_ref, x0_scratch, *, alpha, num_layers, out_channels):
    """One grid step == one batch element of the dense-adjacency propagation.

    x_ref  : (N, Cin_p)      node features (channel-padded), constant over grid
    w*_ref : padded weights / (1, C_p) biases, constant over grid
    a_ref  : (1, N, N)       this batch element's dense adjacency
    o_ref  : (1, N, Cout_p)  log_softmax output (padded lanes hold garbage)
    x0_scratch : VMEM (N, Cout_p) f32, persists across grid steps
    """
    # --- MLP (lin0 + ReLU, lin1): compute once, keep resident in VMEM -------
    @pl.when(pl.program_id(0) == 0)
    def _():
        h = jnp.dot(x_ref[...], w1_ref[...], preferred_element_type=jnp.float32)
        h = jnp.maximum(h + b1_ref[...], 0.0)          # ReLU (dropout p=0 no-op)
        x0 = jnp.dot(h, w2_ref[...], preferred_element_type=jnp.float32)
        x0_scratch[...] = x0 + b2_ref[...]

    # --- APPNP propagation: xp <- (1-a) * (A @ xp) + a * x0 ------------------
    a = a_ref[0]                    # (N, N)
    x0 = x0_scratch[...]            # (N, Cout_p); padded channels are exactly 0
    xp = x0
    for _ in range(num_layers):     # small static trip count -> unrolled
        ax = jnp.dot(a, xp, preferred_element_type=jnp.float32)
        xp = (1.0 - alpha) * ax + alpha * x0

    # --- log_softmax over the real channels (mask the padded lanes) ----------
    lane = jax.lax.broadcasted_iota(jnp.int32, xp.shape, dimension=1)
    xm = jnp.where(lane < out_channels, xp, _NEG_BIG)
    m = jnp.max(xm, axis=-1, keepdims=True)
    lse = jnp.log(jnp.sum(jnp.exp(xm - m), axis=-1, keepdims=True)) + m
    o_ref[0] = xm - lse


# ----------------------------- Wrapper ---------------------------------------

def _round_up(n, m):
    return ((n + m - 1) // m) * m


def _pad_to(a, shape):
    pads = [(0, t - s) for s, t in zip(a.shape, shape)]
    if any(p[1] for p in pads):
        return jnp.pad(a, pads)
    return a


def appnp_forward(x, adjs, params, *, alpha=0.1, num_layers=2):
    """APPNP(num_linear=2, dropout=0, batch_norm=False) forward, eval mode.

    x     : [N, Cin]  node features
    adjs  : [B, N, N] dense batched adjacency
    returns [B*N, out_channels] with log_softmax over dim=1.
    """
    (w1, b1), (w2, b2) = params
    N, cin = x.shape
    B = adjs.shape[0]
    hid = w1.shape[1]
    cout = w2.shape[1]

    LANE = 128
    cin_p = _round_up(cin, LANE)
    hid_p = _round_up(hid, LANE)
    cout_p = _round_up(cout, LANE)

    # Zero-pad channel axes so every lane axis is a full 128 lanes; zeros in
    # the padded weight rows/cols keep the padded channels exactly zero all
    # the way through the propagation.
    x_p = _pad_to(x, (N, cin_p))
    w1_p = _pad_to(w1, (cin_p, hid_p))
    b1_p = _pad_to(b1.reshape(1, -1), (1, hid_p))
    w2_p = _pad_to(w2, (hid_p, cout_p))
    b2_p = _pad_to(b2.reshape(1, -1), (1, cout_p))

    kern = functools.partial(
        _appnp_fused_kernel, alpha=alpha, num_layers=num_layers, out_channels=cout)

    out = pl.pallas_call(
        kern,
        out_shape=jax.ShapeDtypeStruct((B, N, cout_p), jnp.float32),
        grid=(B,),
        in_specs=[
            pl.BlockSpec((N, cin_p), lambda b: (0, 0)),      # x (constant)
            pl.BlockSpec((cin_p, hid_p), lambda b: (0, 0)),  # w1
            pl.BlockSpec((1, hid_p), lambda b: (0, 0)),      # b1
            pl.BlockSpec((hid_p, cout_p), lambda b: (0, 0)),  # w2
            pl.BlockSpec((1, cout_p), lambda b: (0, 0)),     # b2
            pl.BlockSpec((1, N, N), lambda b: (b, 0, 0)),    # adjacency (streams)
        ],
        out_specs=pl.BlockSpec((1, N, cout_p), lambda b: (b, 0, 0)),
        scratch_shapes=[pltpu.VMEM((N, cout_p), jnp.float32)],  # resident x0
        # Batch axis must be 'arbitrary': the x0 scratch is written at b==0 and
        # consumed by every later grid step (carried dependency).
        compiler_params=pltpu.CompilerParams(dimension_semantics=("arbitrary",)),
    )(x_p, w1_p, b1_p, w2_p, b2_p, adjs)

    # [B, N, Cout_p] -> [B*N, Cout]; drop the padded lanes.
    return out.reshape(B * N, cout_p)[:, :cout]


# ----------------------------- Parameter init --------------------------------

def init_gcn_linear(key, in_channels, out_channels):
    # Mirrors GCNLinear.reset_parameters: stdv = 1/sqrt(in_channels),
    # weight, bias ~ U(-stdv, stdv).
    stdv = 1.0 / math.sqrt(in_channels)
    kw, kb = jax.random.split(key)
    w = jax.random.uniform(kw, (in_channels, out_channels), jnp.float32, -stdv, stdv)
    b = jax.random.uniform(kb, (out_channels,), jnp.float32, -stdv, stdv)
    return w, b


# ----------------------------- Main ------------------------------------------

if __name__ == "__main__":
    N = 64            # number of nodes
    IN_C = 16         # in_channels
    HID = 32          # hidden_channels
    OUT_C = 8         # out_channels
    B = 2             # batch of dense adjacency matrices (adjs is 3-D)
    ALPHA = 0.1
    NUM_LAYERS = 2

    key = jax.random.PRNGKey(0)
    kx, ka, k1, k2 = jax.random.split(key, 4)

    x = jax.random.normal(kx, (N, IN_C), jnp.float32)
    a_raw = jax.random.uniform(ka, (B, N, N), jnp.float32)
    adjs = a_raw / jnp.sum(a_raw, axis=-1, keepdims=True)   # row-normalized

    params = (
        init_gcn_linear(k1, IN_C, HID),
        init_gcn_linear(k2, HID, OUT_C),
    )

    out = appnp_forward(x, adjs, params, alpha=ALPHA, num_layers=NUM_LAYERS)
    out = jax.block_until_ready(out)

    assert out.shape == (B * N, OUT_C), out.shape
    # log_softmax rows should sum (in prob space) to ~1.
    assert jnp.allclose(jnp.sum(jnp.exp(out), axis=1), 1.0, atol=1e-4)

    # Cross-check against a pure-JAX reference of the same forward.
    (w1, b1), (w2, b2) = params
    h_ref = jnp.maximum(x @ w1 + b1, 0.0)
    x0_ref = h_ref @ w2 + b2
    xp_ref = jnp.broadcast_to(x0_ref[None], (B, N, OUT_C))
    for _ in range(NUM_LAYERS):
        xp_ref = (1.0 - ALPHA) * jnp.einsum("bij,bjc->bic", adjs, xp_ref) + ALPHA * x0_ref
    ref = jax.nn.log_softmax(xp_ref.reshape(-1, OUT_C), axis=1)
    assert jnp.allclose(out, ref, atol=1e-4, rtol=1e-4)

    print("KERNEL_OK")
</pallas_src>

<mosaic_0001>
module attributes {stable_mosaic.version = 11 : i64} {
  func.func @_appnp_fused_kernel(%arg0: i32, %arg1: memref<64x128xf32, #tpu.memory_space<vmem>>, %arg2: memref<128x128xf32, #tpu.memory_space<vmem>>, %arg3: memref<1x128xf32, #tpu.memory_space<vmem>>, %arg4: memref<128x128xf32, #tpu.memory_space<vmem>>, %arg5: memref<1x128xf32, #tpu.memory_space<vmem>>, %arg6: memref<1x64x64xf32, #tpu.memory_space<vmem>>, %arg7: memref<1x64x128xf32, #tpu.memory_space<vmem>>, %arg8: memref<64x128xf32, #tpu.memory_space<vmem>>) attributes {dimension_semantics = [#tpu.dimension_semantics<arbitrary>], iteration_bounds = array<i64: 2>, scalar_prefetch = 0 : i64, scratch_operands = 1 : i64, tpu.core_type = #tpu.core_type<tc>, window_params = [{pipeline_mode = #tpu.pipeline_mode<synchronous>, transform_indices = @transform_0, window_bounds = array<i64: 64, 128>}, {pipeline_mode = #tpu.pipeline_mode<synchronous>, transform_indices = @transform_1, window_bounds = array<i64: 128, 128>}, {pipeline_mode = #tpu.pipeline_mode<synchronous>, transform_indices = @transform_2, window_bounds = array<i64: 1, 128>}, {pipeline_mode = #tpu.pipeline_mode<synchronous>, transform_indices = @transform_3, window_bounds = array<i64: 128, 128>}, {pipeline_mode = #tpu.pipeline_mode<synchronous>, transform_indices = @transform_4, window_bounds = array<i64: 1, 128>}, {transform_indices = @transform_5, window_bounds = array<i64: 1, 64, 64>}, {transform_indices = @transform_6, window_bounds = array<i64: 1, 64, 128>}]} {
    %c0_i32 = arith.constant 0 : i32
    %0 = arith.cmpi eq, %arg0, %c0_i32 : i32
    %1 = arith.extui %0 : i1 to i32
    %c0_i32_0 = arith.constant 0 : i32
    %2 = arith.cmpi ne, %1, %c0_i32_0 : i32
    scf.if %2 {
      %c0_16 = arith.constant 0 : index
      %c0_17 = arith.constant 0 : index
      %37 = vector.load %arg1[%c0_16, %c0_17] : memref<64x128xf32, #tpu.memory_space<vmem>>, vector<64x128xf32>
      %c0_18 = arith.constant 0 : index
      %c0_19 = arith.constant 0 : index
      %38 = vector.load %arg2[%c0_18, %c0_19] : memref<128x128xf32, #tpu.memory_space<vmem>>, vector<128x128xf32>
      %cst_20 = arith.constant dense<0.000000e+00> : vector<64x128xf32>
      %39 = tpu.matmul %37, %38, %cst_20 {dimension_numbers = #tpu.dot_dimension_numbers<[1], [0], [0], [1], [0, 0, 1, 1], [], []>} : vector<64x128xf32>, vector<128x128xf32>, vector<64x128xf32> -> vector<64x128xf32>
      %c0_21 = arith.constant 0 : index
      %c0_22 = arith.constant 0 : index
      %40 = vector.load %arg3[%c0_21, %c0_22] : memref<1x128xf32, #tpu.memory_space<vmem>>, vector<1x128xf32>
      %41 = vector.broadcast %40 : vector<1x128xf32> to vector<64x128xf32>
      %42 = arith.addf %39, %41 : vector<64x128xf32>
      %cst_23 = arith.constant 0.000000e+00 : f32
      %43 = vector.broadcast %cst_23 : f32 to vector<64x128xf32>
      %44 = arith.maximumf %42, %43 : vector<64x128xf32>
      %c0_24 = arith.constant 0 : index
      %c0_25 = arith.constant 0 : index
      %45 = vector.load %arg4[%c0_24, %c0_25] : memref<128x128xf32, #tpu.memory_space<vmem>>, vector<128x128xf32>
      %cst_26 = arith.constant dense<0.000000e+00> : vector<64x128xf32>
      %46 = tpu.matmul %44, %45, %cst_26 {dimension_numbers = #tpu.dot_dimension_numbers<[1], [0], [0], [1], [0, 0, 1, 1], [], []>} : vector<64x128xf32>, vector<128x128xf32>, vector<64x128xf32> -> vector<64x128xf32>
      %c0_27 = arith.constant 0 : index
      %c0_28 = arith.constant 0 : index
      %47 = vector.load %arg5[%c0_27, %c0_28] : memref<1x128xf32, #tpu.memory_space<vmem>>, vector<1x128xf32>
      %48 = vector.broadcast %47 : vector<1x128xf32> to vector<64x128xf32>
      %49 = arith.addf %46, %48 : vector<64x128xf32>
      %c0_29 = arith.constant 0 : index
      %c0_30 = arith.constant 0 : index
      %50 = vector.load %arg8[%c0_29, %c0_30] : memref<64x128xf32, #tpu.memory_space<vmem>>, vector<64x128xf32>
      tpu.vector_store %arg8[%c0_29, %c0_30], %49 {strides = array<i32>} : memref<64x128xf32, #tpu.memory_space<vmem>>, vector<64x128xf32>,
    } else {
    }
    %c0 = arith.constant 0 : index
    %c0_1 = arith.constant 0 : index
    %c0_2 = arith.constant 0 : index
    %3 = vector.load %arg6[%c0, %c0_1, %c0_2] : memref<1x64x64xf32, #tpu.memory_space<vmem>>, vector<1x64x64xf32>
    %4 = vector.shape_cast %3 : vector<1x64x64xf32> to vector<64x64xf32>
    %c0_3 = arith.constant 0 : index
    %c0_4 = arith.constant 0 : index
    %5 = vector.load %arg8[%c0_3, %c0_4] : memref<64x128xf32, #tpu.memory_space<vmem>>, vector<64x128xf32>
    %cst = arith.constant dense<0.000000e+00> : vector<64x128xf32>
    %6 = tpu.matmul %4, %5, %cst {dimension_numbers = #tpu.dot_dimension_numbers<[1], [0], [0], [1], [0, 0, 1, 1], [], []>} : vector<64x64xf32>, vector<64x128xf32>, vector<64x128xf32> -> vector<64x128xf32>
    %cst_5 = arith.constant 0.899999976 : f32
    %7 = vector.broadcast %cst_5 : f32 to vector<64x128xf32>
    %8 = arith.mulf %7, %6 : vector<64x128xf32>
    %cst_6 = arith.constant 1.000000e-01 : f32
    %9 = vector.broadcast %cst_6 : f32 to vector<64x128xf32>
    %10 = arith.mulf %9, %5 : vector<64x128xf32>
    %11 = arith.addf %8, %10 : vector<64x128xf32>
    %cst_7 = arith.constant dense<0.000000e+00> : vector<64x128xf32>
    %12 = tpu.matmul %4, %11, %cst_7 {dimension_numbers = #tpu.dot_dimension_numbers<[1], [0], [0], [1], [0, 0, 1, 1], [], []>} : vector<64x64xf32>, vector<64x128xf32>, vector<64x128xf32> -> vector<64x128xf32>
    %cst_8 = arith.constant 0.899999976 : f32
    %13 = vector.broadcast %cst_8 : f32 to vector<64x128xf32>
    %14 = arith.mulf %13, %12 : vector<64x128xf32>
    %cst_9 = arith.constant 1.000000e-01 : f32
    %15 = vector.broadcast %cst_9 : f32 to vector<64x128xf32>
    %16 = arith.mulf %15, %5 : vector<64x128xf32>
    %17 = arith.addf %14, %16 : vector<64x128xf32>
    %18 = tpu.iota {dimensions = array<i32: 1>} : vector<64x128xi32>
    %c8_i32 = arith.constant 8 : i32
    %19 = vector.broadcast %c8_i32 : i32 to vector<64x128xi32>
    %20 = arith.cmpi slt, %18, %19 : vector<64x128xi32>
    %cst_10 = arith.constant -1.000000e+30 : f32
    %21 = vector.broadcast %cst_10 : f32 to vector<64x128xf32>
    %22 = arith.select %20, %17, %21 : vector<64x128xi1>, vector<64x128xf32>
    %cst_11 = arith.constant dense<0xFF800000> : vector<64xf32>
    %23 = vector.multi_reduction <maximumf>, %22, %cst_11 [1] : vector<64x128xf32> to vector<64xf32>
    %24 = vector.shape_cast %23 : vector<64xf32> to vector<64x1xf32>
    %25 = vector.broadcast %24 : vector<64x1xf32> to vector<64x128xf32>
    %26 = arith.subf %22, %25 : vector<64x128xf32>
    %27 = math.exp %26 : vector<64x128xf32>
    %cst_12 = arith.constant dense<0.000000e+00> : vector<64xf32>
    %28 = vector.multi_reduction <add>, %27, %cst_12 [1] : vector<64x128xf32> to vector<64xf32>
    %29 = vector.shape_cast %28 : vector<64xf32> to vector<64x1xf32>
    %30 = math.log %29 : vector<64x1xf32>
    %31 = arith.addf %30, %24 : vector<64x1xf32>
    %32 = vector.broadcast %31 : vector<64x1xf32> to vector<64x128xf32>
    %33 = arith.subf %22, %32 : vector<64x128xf32>
    %c0_13 = arith.constant 0 : index
    %c0_14 = arith.constant 0 : index
    %c0_15 = arith.constant 0 : index
    %34 = vector.load %arg7[%c0_13, %c0_14, %c0_15] : memref<1x64x128xf32, #tpu.memory_space<vmem>>, vector<1x64x128xf32>
    %35 = vector.shape_cast %34 : vector<1x64x128xf32> to vector<64x128xf32>
    %36 = vector.shape_cast %33 : vector<64x128xf32> to vector<1x64x128xf32>
    tpu.vector_store %arg7[%c0_13, %c0_14, %c0_15], %36 {strides = array<i32>} : memref<1x64x128xf32, #tpu.memory_space<vmem>>, vector<1x64x128xf32>,
    return
  }
  func.func @transform_0(%arg0: i32) -> (i32, i32) {
    %c0_i32 = arith.constant 0 : i32
    %c0_i32_0 = arith.constant 0 : i32
    %c0_i32_1 = arith.constant 0 : i32
    return %c0_i32, %c0_i32_0 : i32, i32
  }
  func.func @transform_1(%arg0: i32) -> (i32, i32) {
    %c0_i32 = arith.constant 0 : i32
    %c0_i32_0 = arith.constant 0 : i32
    %c0_i32_1 = arith.constant 0 : i32
    return %c0_i32, %c0_i32_0 : i32, i32
  }
  func.func @transform_2(%arg0: i32) -> (i32, i32) {
    %c0_i32 = arith.constant 0 : i32
    %c0_i32_0 = arith.constant 0 : i32
    %c0_i32_1 = arith.constant 0 : i32
    return %c0_i32, %c0_i32_0 : i32, i32
  }
  func.func @transform_3(%arg0: i32) -> (i32, i32) {
    %c0_i32 = arith.constant 0 : i32
    %c0_i32_0 = arith.constant 0 : i32
    %c0_i32_1 = arith.constant 0 : i32
    return %c0_i32, %c0_i32_0 : i32, i32
  }
  func.func @transform_4(%arg0: i32) -> (i32, i32) {
    %c0_i32 = arith.constant 0 : i32
    %c0_i32_0 = arith.constant 0 : i32
    %c0_i32_1 = arith.constant 0 : i32
    return %c0_i32, %c0_i32_0 : i32, i32
  }
  func.func @transform_5(%arg0: i32) -> (i32, i32, i32) {
    %c0_i32 = arith.constant 0 : i32
    %c0_i32_0 = arith.constant 0 : i32
    %c0_i32_1 = arith.constant 0 : i32
    return %arg0, %c0_i32, %c0_i32_0 : i32, i32, i32
  }
  func.func @transform_6(%arg0: i32) -> (i32, i32, i32) {
    %c0_i32 = arith.constant 0 : i32
    %c0_i32_0 = arith.constant 0 : i32
    %c0_i32_1 = arith.constant 0 : i32
    return %arg0, %c0_i32, %c0_i32_0 : i32, i32, i32
  }
}

</mosaic_0001>

<llo_original>
// kernel: tpu_custom_call.1
$region0: #{tpu_custom_call.1}
  #allocation0 [shape = 'u32[]', space=smem, size = 0x4, offset = 0x4, fixed_abs, tag = 'smem constant byte address 0x4 - core index']
  #allocation1 [shape = 'u32[144,128]{1,0:T(1,128)}', space=vmem, size = 0x12000, scoped, tag = 'internal scratch']
  #allocation2 [shape = 'f32[64,128]{1,0:T(8,128)}', space=vmem, size = 0x8000, scoped, tag = 'scratch operand']
  %s0 = inlined_call_operand.hbm [shape: f32[64,128], index: 0, kind: input, shape index: {}]
  %s1 = inlined_call_operand.hbm [shape: f32[128,128], index: 1, kind: input, shape index: {}]
  %s2 = inlined_call_operand.vmem [shape: f32[1,128], index: 2, kind: input, shape index: {}]
  %s3 = inlined_call_operand.hbm [shape: f32[128,128], index: 3, kind: input, shape index: {}]
  %s4 = inlined_call_operand.vmem [shape: f32[1,128], index: 4, kind: input, shape index: {}]
  %s5 = inlined_call_operand.hbm [shape: f32[2,64,64], index: 5, kind: input, shape index: {}]
  %s6 = inlined_call_operand.hbm [shape: f32[2,64,128], index: 6, kind: output, shape index: {}]
  %s7 = sld [smem:[#allocation0]]
  $region77: #{tpu_custom_call.1} parent=0
    _
  %s9 = ssub.s32 1, %s7
  %s10 = scalar_select 0, %s9, %s7
  $region1: #{tpu_custom_call.1} parent=0
    #allocation3 [shape = 'u8[32768]{0}', space=vmem, size = 0x8000, scoped, tag = 'input window, operand 0, single buffered']
    #allocation4 [shape = 's32[2]{0}', space=sflag, size = 0x8, scoped, tag = 'scoped memory for tpu_custom_call.1']
    #allocation5 [shape = 's32[2]{0}', space=sflag, size = 0x8, scoped, tag = 'scoped memory for tpu_custom_call.1']
    #allocation6 [shape = 'u8[65536]{0}', space=vmem, size = 0x10000, scoped, tag = 'input window, operand 1, single buffered']
    #allocation7 [shape = 's32[1]{0}', space=sflag, size = 0x4, scoped, tag = 'scoped memory for tpu_custom_call.1']
    #allocation8 [shape = 'u8[65536]{0}', space=vmem, size = 0x10000, scoped, tag = 'input window, operand 3, single buffered']
    #allocation9 [shape = 'u8[65536]{0}', space=vmem, size = 0x10000, scoped, tag = 'input window, operand 5']
    #allocation10 [shape = 's32[2]{0}', space=sflag, size = 0x8, scoped, tag = 'scoped memory for tpu_custom_call.1']
    #allocation11 [shape = 'u8[65536]{0}', space=vmem, size = 0x10000, scoped, tag = 'output window, operand 0']
    %11 = vsyncpa [#allocation4], 0
    %12 = vsyncpa [#allocation7], 0
    %13 = vsyncpa [#allocation10], 0
    %s14 = scalar_lea.sflag [#allocation10], 1
    %15 = vsyncpa %s14, 0
    %16 = vsyncpa [#allocation5], 0
    %s17 = scalar_lea.sflag [#allocation5], 1
    %18 = vsyncpa %s17, 0
    loop: start=0, step=1, limit=4
    $region2: #{tpu_custom_call.1} parent=1 // loop_pre_header
      _
    $region3: #{tpu_custom_call.1} parent=1 // loop_header
      %s20 = sphi 0, %s24
      %p21 = scmp.ge.s32.totalorder %s20, 4
      %s28 = sphi 0, %s28
      %s30 = sphi 0, %s28
      %s31 = sphi 0, %s30
      %s45 = sphi 0, %s31
      %s49 = sphi 0, %s49
      %s51 = sphi 0, %s49
      %s52 = sphi 0, %s51
      %s66 = sphi 0, %s52
      %s70 = sphi 0, %s70
      %s72 = sphi 0, %s70
      %s73 = sphi 0, %s72
      %s87 = sphi 0, %s73
      %s91 = sphi 0, %s91
      %s93 = sphi 0, %s91
      %s94 = sphi 0, %s93
      %s108 = sphi 0, %s94
      %s112 = sphi 0, %s112
      %s114 = sphi 0, %s112
      %s115 = sphi 0, %s114
      %s129 = sphi 0, %s115
      %s135 = sphi 0, %s137
      %s138 = sphi 0, %s135
      %s139 = sphi 0, %s138
      %s155 = sphi 0, %s139
      %s161 = sphi 0, %s163
      %s164 = sphi 0, %s161
      %s165 = sphi 0, %s164
      %s181 = sphi 0, %s165
    $region4: #{tpu_custom_call.1} parent=1 // loop_header_branch
      %23 = sbr.rel (%p21) target = $region8
    $region5: #{tpu_custom_call.1} parent=1 // loop_body
      %s25 = ssub.s32 %s20, 1
      %s26 = ssub.s32 %s20, 2
      %s27 = sadd.s32 %s20, 1
      %s29 = sadd.s32 %s28, 1
      %p32 = scmp.eq.s32.totalorder %s20, 1
      %p33 = scmp.ne.s32.totalorder %s28, %s30
      %p34 = scmp.eq.s32.totalorder %s20, 0
      %p35 = por %p33, %p34
      %p36 = scmp.ne.s32.totalorder %s28, %s30
      %p37 = scmp.eq.s32.totalorder %s25, 1
      %p38 = por %p36, %p37
      %p39 = scmp.ne.s32.totalorder %s30, %s31
      %p40 = scmp.eq.s32.totalorder %s25, 0
      %p41 = por %p39, %p40
      %p42 = scmp.ne.s32.totalorder %s30, %s31
      %p43 = scmp.eq.s32.totalorder %s26, 1
      %p44 = por %p42, %p43
      %p46 = scmp.ne.s32.totalorder %s31, %s45
      %p47 = scmp.eq.s32.totalorder %s26, 0
      %p48 = por %p46, %p47
      %s50 = sadd.s32 %s49, 1
      %p53 = scmp.eq.s32.totalorder %s20, 1
      %p54 = scmp.ne.s32.totalorder %s49, %s51
      %p55 = scmp.eq.s32.totalorder %s20, 0
      %p56 = por %p54, %p55
      %p57 = scmp.ne.s32.totalorder %s49, %s51
      %p58 = scmp.eq.s32.totalorder %s25, 1
      %p59 = por %p57, %p58
      %p60 = scmp.ne.s32.totalorder %s51, %s52
      %p61 = scmp.eq.s32.totalorder %s25, 0
      %p62 = por %p60, %p61
      %p63 = scmp.ne.s32.totalorder %s51, %s52
      %p64 = scmp.eq.s32.totalorder %s26, 1
      %p65 = por %p63, %p64
      %p67 = scmp.ne.s32.totalorder %s52, %s66
      %p68 = scmp.eq.s32.totalorder %s26, 0
      %p69 = por %p67, %p68
      %s71 = sadd.s32 %s70, 1
      %p74 = scmp.eq.s32.totalorder %s20, 1
      %p75 = scmp.ne.s32.totalorder %s70, %s72
      %p76 = scmp.eq.s32.totalorder %s20, 0
      %p77 = por %p75, %p76
      %p78 = scmp.ne.s32.totalorder %s70, %s72
      %p79 = scmp.eq.s32.totalorder %s25, 1
      %p80 = por %p78, %p79
      %p81 = scmp.ne.s32.totalorder %s72, %s73
      %p82 = scmp.eq.s32.totalorder %s25, 0
      %p83 = por %p81, %p82
      %p84 = scmp.ne.s32.totalorder %s72, %s73
      %p85 = scmp.eq.s32.totalorder %s26, 1
      %p86 = por %p84, %p85
      %p88 = scmp.ne.s32.totalorder %s73, %s87
      %p89 = scmp.eq.s32.totalorder %s26, 0
      %p90 = por %p88, %p89
      %s92 = sadd.s32 %s91, 1
      %p95 = scmp.eq.s32.totalorder %s20, 1
      %p96 = scmp.ne.s32.totalorder %s91, %s93
      %p97 = scmp.eq.s32.totalorder %s20, 0
      %p98 = por %p96, %p97
      %p99 = scmp.ne.s32.totalorder %s91, %s93
      %p100 = scmp.eq.s32.totalorder %s25, 1
      %p101 = por %p99, %p100
      %p102 = scmp.ne.s32.totalorder %s93, %s94
      %p103 = scmp.eq.s32.totalorder %s25, 0
      %p104 = por %p102, %p103
      %p105 = scmp.ne.s32.totalorder %s93, %s94
      %p106 = scmp.eq.s32.totalorder %s26, 1
      %p107 = por %p105, %p106
      %p109 = scmp.ne.s32.totalorder %s94, %s108
      %p110 = scmp.eq.s32.totalorder %s26, 0
      %p111 = por %p109, %p110
      %s113 = sadd.s32 %s112, 1
      %p116 = scmp.eq.s32.totalorder %s20, 1
      %p117 = scmp.ne.s32.totalorder %s112, %s114
      %p118 = scmp.eq.s32.totalorder %s20, 0
      %p119 = por %p117, %p118
      %p120 = scmp.ne.s32.totalorder %s112, %s114
      %p121 = scmp.eq.s32.totalorder %s25, 1
      %p122 = por %p120, %p121
      %p123 = scmp.ne.s32.totalorder %s114, %s115
      %p124 = scmp.eq.s32.totalorder %s25, 0
      %p125 = por %p123, %p124
      %p126 = scmp.ne.s32.totalorder %s114, %s115
      %p127 = scmp.eq.s32.totalorder %s26, 1
      %p128 = por %p126, %p127
      %p130 = scmp.ne.s32.totalorder %s115, %s129
      %p131 = scmp.eq.s32.totalorder %s26, 0
      %p132 = por %p130, %p131
      %s133 = ssub.s32 %s20, %s27
      %p134 = scmp.eq.s32.totalorder %s133, 0
      %s136 = sadd.s32 %s135, 1
      %s137 = scalar_select %p134, %s135, %s136
      %p140 = pneg %p134
      %p141 = scmp.eq.s32.totalorder %s20, 1
      %p142 = por %p140, %p141
      %p143 = scmp.ne.s32.totalorder %s135, %s138
      %p144 = scmp.eq.s32.totalorder %s20, 0
      %p145 = por %p143, %p144
      %p146 = scmp.ne.s32.totalorder %s135, %s138
      %p147 = scmp.eq.s32.totalorder %s25, 1
      %p148 = por %p146, %p147
      %p149 = scmp.ne.s32.totalorder %s138, %s139
      %p150 = scmp.eq.s32.totalorder %s25, 0
      %p151 = por %p149, %p150
      %p152 = scmp.ne.s32.totalorder %s138, %s139
      %p153 = scmp.eq.s32.totalorder %s26, 1
      %p154 = por %p152, %p153
      %p156 = scmp.ne.s32.totalorder %s139, %s155
      %p157 = scmp.eq.s32.totalorder %s26, 0
      %p158 = por %p156, %p157
      %s159 = ssub.s32 %s20, %s27
      %p160 = scmp.eq.s32.totalorder %s159, 0
      %s162 = sadd.s32 %s161, 1
      %s163 = scalar_select %p160, %s161, %s162
      %p166 = pneg %p160
      %p167 = scmp.eq.s32.totalorder %s20, 1
      %p168 = por %p166, %p167
      %p169 = scmp.ne.s32.totalorder %s161, %s164
      %p170 = scmp.eq.s32.totalorder %s20, 0
      %p171 = por %p169, %p170
      %p172 = scmp.ne.s32.totalorder %s161, %s164
      %p173 = scmp.eq.s32.totalorder %s25, 1
      %p174 = por %p172, %p173
      %p175 = scmp.ne.s32.totalorder %s164, %s165
      %p176 = scmp.eq.s32.totalorder %s25, 0
      %p177 = por %p175, %p176
      %p178 = scmp.ne.s32.totalorder %s164, %s165
      %p179 = scmp.eq.s32.totalorder %s26, 1
      %p180 = por %p178, %p179
      %p182 = scmp.ne.s32.totalorder %s165, %s181
      %p183 = scmp.eq.s32.totalorder %s26, 0
      %p184 = por %p182, %p183
      %p185 = scmp.le.s32.totalorder 1, %s20
      %p186 = scmp.lt.s32.totalorder %s20, 3
      %p187 = pnand %p185, %p186
      %p188 = pneg %p187
      // Predicated region
      $region9: #{tpu_custom_call.1} parent=5 // pred_check
        _
      $region10: #{tpu_custom_call.1} parent=5 // pred_check_branch
        %190 = sbr.rel (%p187) target = $region12
      $region11: #{tpu_custom_call.1} parent=5 // pred_region
        %s191 = ssub.s32 %s20, 1
        // Predicated region
        $region13: #{tpu_custom_call.1} parent=11 // pred_check
          %p192 = pneg %p41
        $region14: #{tpu_custom_call.1} parent=11 // pred_check_branch
          %194 = sbr.rel (%p192) target = $region16
        $region15: #{tpu_custom_call.1} parent=11 // pred_region
          %s196 = ssub.s32 1024, 1024
          %197 = vsyncadd [#allocation4], %s196
          %s198 = sshll.u32 [#allocation3], 4
          %s199 = int_to_ptr.vmem [resolvable:$true] %s198
          %204 = dma.hbm_to_vmem [thread:$0]  %s0, 1024, %s199, [#allocation4], 128, 128, 8
        $region16: #{tpu_custom_call.1} parent=11 // pred_fallthru
          _
        // Predicated region
        $region17: #{tpu_custom_call.1} parent=11 // pred_check
          %p205 = pneg %p62
        $region18: #{tpu_custom_call.1} parent=11 // pred_check_branch
          %207 = sbr.rel (%p205) target = $region20
        $region19: #{tpu_custom_call.1} parent=11 // pred_region
          %s209 = ssub.s32 2048, 2048
          %210 = vsyncadd [#allocation7], %s209
          %s211 = sshll.u32 [#allocation6], 4
          %s212 = int_to_ptr.vmem [resolvable:$true] %s211
          %217 = dma.hbm_to_vmem [thread:$0]  %s1, 2048, %s212, [#allocation7], 128, 128, 8
        $region20: #{tpu_custom_call.1} parent=11 // pred_fallthru
          _
        // Predicated region
        $region21: #{tpu_custom_call.1} parent=11 // pred_check
          %p218 = pneg %p83
        $region22: #{tpu_custom_call.1} parent=11 // pred_check_branch
          %220 = sbr.rel (%p218) target = $region24
        $region23: #{tpu_custom_call.1} parent=11 // pred_region
          _
        $region24: #{tpu_custom_call.1} parent=11 // pred_fallthru
          _
        // Predicated region
        $region25: #{tpu_custom_call.1} parent=11 // pred_check
          %p221 = pneg %p104
        $region26: #{tpu_custom_call.1} parent=11 // pred_check_branch
          %223 = sbr.rel (%p221) target = $region28
        $region27: #{tpu_custom_call.1} parent=11 // pred_region
          %s225 = ssub.s32 2048, 2048
          %226 = vsyncadd [#allocation7], %s225
          %s227 = sshll.u32 [#allocation8], 4
          %s228 = int_to_ptr.vmem [resolvable:$true] %s227
          %233 = dma.hbm_to_vmem [thread:$0]  %s3, 2048, %s228, [#allocation7], 128, 128, 8
        $region28: #{tpu_custom_call.1} parent=11 // pred_fallthru
          _
        // Predicated region
        $region29: #{tpu_custom_call.1} parent=11 // pred_check
          %p234 = pneg %p125
        $region30: #{tpu_custom_call.1} parent=11 // pred_check_branch
          %236 = sbr.rel (%p234) target = $region32
        $region31: #{tpu_custom_call.1} parent=11 // pred_region
          _
        $region32: #{tpu_custom_call.1} parent=11 // pred_fallthru
          _
      $region12: #{tpu_custom_call.1} parent=5 // pred_fallthru
        _
      %p237 = scmp.lt.s32.totalorder %s20, 2
      // Predicated region
      $region33: #{tpu_custom_call.1} parent=5 // pred_check
        %p238 = pneg %p237
      $region34: #{tpu_custom_call.1} parent=5 // pred_check_branch
        %240 = sbr.rel (%p238) target = $region36
      $region35: #{tpu_custom_call.1} parent=5 // pred_region
        // Predicated region
        $region37: #{tpu_custom_call.1} parent=35 // pred_check
          %p241 = pneg %p145
        $region38: #{tpu_custom_call.1} parent=35 // pred_check_branch
          %243 = sbr.rel (%p241) target = $region40
        $region39: #{tpu_custom_call.1} parent=35 // pred_region
          %s244 = sand.u32 %s135, 1
          %s245 = scalar_lea.sflag [#allocation10], %s244
          %s246 = sand.u32 %s135, 1
          %s247 = smul.addr %s246, 64
          %s248 = scalar_lea.vmem [#allocation9], %s247
          %s250 = ssub.s32 1024, 1024
          %251 = vsyncadd %s245, %s250
          %s252 = smul.addr %s20, 8
          %s253 = smul.addr %s252, 128
          %s254 = scalar_lea.hbm %s5, %s253
          %s255 = sshll.u32 %s248, 4
          %s256 = int_to_ptr.vmem [resolvable:$true] %s255
          %261 = dma.hbm_to_vmem [thread:$0]  %s254, 1024, %s256, %s245, 128, 128, 8
        $region40: #{tpu_custom_call.1} parent=35 // pred_fallthru
          _
      $region36: #{tpu_custom_call.1} parent=5 // pred_fallthru
        _
      %p262 = scmp.le.s32.totalorder 1, %s20
      %p263 = scmp.lt.s32.totalorder %s20, 3
      %p264 = pnand %p262, %p263
      %p265 = pneg %p264
      // Predicated region
      $region41: #{tpu_custom_call.1} parent=5 // pred_check
        _
      $region42: #{tpu_custom_call.1} parent=5 // pred_check_branch
        %267 = sbr.rel (%p264) target = $region44
      $region43: #{tpu_custom_call.1} parent=5 // pred_region
        %s268 = ssub.s32 %s20, 1
        // Predicated region
        $region45: #{tpu_custom_call.1} parent=43 // pred_check
          %p269 = pneg %p41
        $region46: #{tpu_custom_call.1} parent=43 // pred_check_branch
          %271 = sbr.rel (%p269) target = $region48
        $region47: #{tpu_custom_call.1} parent=43 // pred_region
          %272 = dma.done [#allocation4], 1024
        $region48: #{tpu_custom_call.1} parent=43 // pred_fallthru
          _
        // Predicated region
        $region49: #{tpu_custom_call.1} parent=43 // pred_check
          %p273 = pneg %p62
        $region50: #{tpu_custom_call.1} parent=43 // pred_check_branch
          %275 = sbr.rel (%p273) target = $region52
        $region51: #{tpu_custom_call.1} parent=43 // pred_region
          %276 = dma.done [#allocation7], 2048
        $region52: #{tpu_custom_call.1} parent=43 // pred_fallthru
          _
        // Predicated region
        $region53: #{tpu_custom_call.1} parent=43 // pred_check
          %p277 = pneg %p104
        $region54: #{tpu_custom_call.1} parent=43 // pred_check_branch
          %279 = sbr.rel (%p277) target = $region56
        $region55: #{tpu_custom_call.1} parent=43 // pred_region
          %280 = dma.done [#allocation7], 2048
        $region56: #{tpu_custom_call.1} parent=43 // pred_fallthru
          _
        %s281 = sand.u32 %s138, 1
        %s282 = scalar_lea.sflag [#allocation10], %s281
        %s283 = sand.u32 %s138, 1
        %s284 = smul.addr %s283, 64
        %s285 = scalar_lea.vmem [#allocation9], %s284
        // Predicated region
        $region57: #{tpu_custom_call.1} parent=43 // pred_check
          %p286 = pneg %p151
        $region58: #{tpu_custom_call.1} parent=43 // pred_check_branch
          %288 = sbr.rel (%p286) target = $region60
        $region59: #{tpu_custom_call.1} parent=43 // pred_region
          %289 = dma.done %s282, 1024
        $region60: #{tpu_custom_call.1} parent=43 // pred_fallthru
          _
        %p290 = pneg %p41
        %p291 = pneg %p38
        %p292 = pneg %p62
        %p293 = pneg %p59
        %p294 = pneg %p83
        %p295 = pneg %p80
        %p296 = pneg %p104
        %p297 = pneg %p101
        %p298 = pneg %p125
        %p299 = pneg %p122
        %s300 = sand.u32 %s138, 1
        %s301 = scalar_lea.sflag [#allocation10], %s300
        %s302 = sand.u32 %s138, 1
        %s303 = smul.addr %s302, 64
        %s304 = scalar_lea.vmem [#allocation9], %s303
        %p305 = pneg %p151
        %p306 = pneg %p148
        %p307 = pneg %p177
        %p308 = pneg %p174
        %s309 = sand.u32 %s164, 1
        %s310 = scalar_lea.sflag [#allocation5], %s309
        %s311 = sand.u32 %s164, 1
        %s312 = smul.addr %s311, 64
        %s313 = scalar_lea.vmem [#allocation11], %s312
        %p314 = scmp.eq.s32.totalorder %s25, 0
        // Predicated region
        $region61: #{tpu_custom_call.1} parent=43 // pred_check
          %p315 = pneg %p314
        $region62: #{tpu_custom_call.1} parent=43 // pred_check_branch
          %317 = sbr.rel (%p315) target = $region64
        $region63: #{tpu_custom_call.1} parent=43 // pred_region
          %v318 = vld [vmem:[#allocation3] sm:$0xff]
          %v319 = vld [vmem:[#allocation3 + $0x8] sm:$0xff]
          %v320 = vld [vmem:[#allocation3 + $0x10] sm:$0xff]
          %v321 = vld [vmem:[#allocation3 + $0x18] sm:$0xff]
          %v322 = vld [vmem:[#allocation3 + $0x20] sm:$0xff]
          %v323 = vld [vmem:[#allocation3 + $0x28] sm:$0xff]
          %v324 = vld [vmem:[#allocation3 + $0x30] sm:$0xff]
          %v325 = vld [vmem:[#allocation3 + $0x38] sm:$0xff]
          %v326 = vld [vmem:[#allocation6] sm:$0xff]
          %v327 = vld [vmem:[#allocation6 + $0x8] sm:$0xff]
          %v328 = vld [vmem:[#allocation6 + $0x10] sm:$0xff]
          %v329 = vld [vmem:[#allocation6 + $0x18] sm:$0xff]
          %v330 = vld [vmem:[#allocation6 + $0x20] sm:$0xff]
          %v331 = vld [vmem:[#allocation6 + $0x28] sm:$0xff]
          %v332 = vld [vmem:[#allocation6 + $0x30] sm:$0xff]
          %v333 = vld [vmem:[#allocation6 + $0x38] sm:$0xff]
          %v334 = vld [vmem:[#allocation6 + $0x40] sm:$0xff]
          %v335 = vld [vmem:[#allocation6 + $0x48] sm:$0xff]
          %v336 = vld [vmem:[#allocation6 + $0x50] sm:$0xff]
          %v337 = vld [vmem:[#allocation6 + $0x58] sm:$0xff]
          %v338 = vld [vmem:[#allocation6 + $0x60] sm:$0xff]
          %v339 = vld [vmem:[#allocation6 + $0x68] sm:$0xff]
          %v340 = vld [vmem:[#allocation6 + $0x70] sm:$0xff]
          %v341 = vld [vmem:[#allocation6 + $0x78] sm:$0xff]
          %v342 = vld [vmem:[%s2] sm:$0x1]
          %v344 = vlaneseq
          %v345 = vshrl.u32 %v344, 7
          %v346 = vsub.s32 0, %v345
          %v347 = vrot.slane %v342, %v346
          %349 = vmatprep.subr.mxu0 0.0
          %350 = vmatpush1.msra.mxu0 %v326
          %351 = vmatprep.subr.mxu0 0.0
          %352 = vmatpush1.msra.mxu0 %v327
          %353 = vmatprep.subr.mxu0 0.0
          %354 = vmatpush1.msra.mxu0 %v328
          %355 = vmatprep.subr.mxu0 0.0
          %356 = vmatpush1.msra.mxu0 %v329
          %357 = vmatprep.subr.mxu0 0.0
          %358 = vmatpush1.msra.mxu0 %v330
          %359 = vmatprep.subr.mxu0 0.0
          %360 = vmatpush1.msra.mxu0 %v331
          %361 = vmatprep.subr.mxu0 0.0
          %362 = vmatpush1.msra.mxu0 %v332
          %363 = vmatprep.subr.mxu0 0.0
          %364 = vmatpush1.msra.mxu0 %v333
          %365 = vmatprep.subr.mxu0 0.0
          %366 = vmatpush1.msra.mxu0 %v334
          %367 = vmatprep.subr.mxu0 0.0
          %368 = vmatpush1.msra.mxu0 %v335
          %369 = vmatprep.subr.mxu0 0.0
          %370 = vmatpush1.msra.mxu0 %v336
          %371 = vmatprep.subr.mxu0 0.0
          %372 = vmatpush1.msra.mxu0 %v337
          %373 = vmatprep.subr.mxu0 0.0
          %374 = vmatpush1.msra.mxu0 %v338
          %375 = vmatprep.subr.mxu0 0.0
          %376 = vmatpush1.msra.mxu0 %v339
          %377 = vmatprep.subr.mxu0 0.0
          %378 = vmatpush1.msra.mxu0 %v340
          %379 = vmatprep.subr.mxu0 0.0
          %380 = vmatpush1.msra.mxu0 %v341
          %381 = vmatprep.subr.mxu0 0.0
          %382 = vmatpush1.msra.mxu0 0.0
          %383 = vmatprep.subr.mxu0 0.0
          %384 = vmatpush1.msra.mxu0 0.0
          %385 = vmatprep.subr.mxu0 0.0
          %386 = vmatpush1.msra.mxu0 0.0
          %387 = vmatprep.subr.mxu0 0.0
          %388 = vmatpush1.msra.mxu0 0.0
          %389 = vmatprep.subr.mxu0 0.0
          %390 = vmatpush1.msra.mxu0 0.0
          %391 = vmatprep.subr.mxu0 0.0
          %392 = vmatpush1.msra.mxu0 0.0
          %393 = vmatprep.subr.mxu0 0.0
          %394 = vmatpush1.msra.mxu0 0.0
          %395 = vmatprep.subr.mxu0 0.0
          %396 = vmatpush1.msra.mxu0 0.0
          %397 = vmatprep.subr.mxu0 0.0
          %398 = vmatpush1.msra.mxu0 0.0
          %399 = vmatprep.subr.mxu0 0.0
          %400 = vmatpush1.msra.mxu0 0.0
          %401 = vmatprep.subr.mxu0 0.0
          %402 = vmatpush1.msra.mxu0 0.0
          %403 = vmatprep.subr.mxu0 0.0
          %404 = vmatpush1.msra.mxu0 0.0
          %405 = vmatprep.subr.mxu0 0.0
          %406 = vmatpush1.msra.mxu0 0.0
          %407 = vmatprep.subr.mxu0 0.0
          %408 = vmatpush1.msra.mxu0 0.0
          %409 = vmatprep.subr.mxu0 0.0
          %410 = vmatpush1.msra.mxu0 0.0
          %411 = vmatprep.subr.mxu0 0.0
          %412 = vmatpush1.msra.mxu0 0.0
          %413 = vmatprep.mubr.f32.mxu0 0.0
          %414 = vmatmul.mubr.f32.gmra.mrb[0].mxu0 %v318
          %v415 = vpop.f32.mrb[0].mxu0
          %v416 = vadd.f32 %v347, %v415
          %v417 = vpop.f32.mrb[0].mxu0
          %418 = vmatprep.mubr.f32.mxu0 0.0
          %419 = vmatmul.mubr.f32.gmra.mrb[0].mxu0 %v319
          %v420 = vpop.f32.mrb[0].mxu0
          %v421 = vadd.f32 %v347, %v420
          %v422 = vpop.f32.mrb[0].mxu0
          %423 = vmatprep.mubr.f32.mxu0 0.0
          %424 = vmatmul.mubr.f32.gmra.mrb[0].mxu0 %v320
          %v425 = vpop.f32.mrb[0].mxu0
          %v426 = vadd.f32 %v347, %v425
          %v427 = vpop.f32.mrb[0].mxu0
          %428 = vmatprep.mubr.f32.mxu0 0.0
          %429 = vmatmul.mubr.f32.gmra.mrb[0].mxu0 %v321
          %v430 = vpop.f32.mrb[0].mxu0
          %v431 = vadd.f32 %v347, %v430
          %v432 = vpop.f32.mrb[0].mxu0
          %433 = vmatprep.mubr.f32.mxu0 0.0
          %434 = vmatmul.mubr.f32.gmra.mrb[0].mxu0 %v322
          %v435 = vpop.f32.mrb[0].mxu0
          %v436 = vadd.f32 %v347, %v435
          %v437 = vpop.f32.mrb[0].mxu0
          %438 = vmatprep.mubr.f32.mxu0 0.0
          %439 = vmatmul.mubr.f32.gmra.mrb[0].mxu0 %v323
          %v440 = vpop.f32.mrb[0].mxu0
          %v441 = vadd.f32 %v347, %v440
          %v442 = vpop.f32.mrb[0].mxu0
          %443 = vmatprep.mubr.f32.mxu0 0.0
          %444 = vmatmul.mubr.f32.gmra.mrb[0].mxu0 %v324
          %v445 = vpop.f32.mrb[0].mxu0
          %v446 = vadd.f32 %v347, %v445
          %v447 = vpop.f32.mrb[0].mxu0
          %448 = vmatprep.mubr.f32.mxu0 0.0
          %449 = vmatmul.mubr.f32.gmra.mrb[0].mxu0 %v325
          %v450 = vpop.f32.mrb[0].mxu0
          %v451 = vadd.f32 %v347, %v450
          %v452 = vpop.f32.mrb[0].mxu0
          %453 = vdwg.mxu0
          %v454 = vmax.f32 %v416, 0.0
          %v455 = vmax.f32 %v421, 0.0
          %v456 = vmax.f32 %v426, 0.0
          %v457 = vmax.f32 %v431, 0.0
          %v458 = vmax.f32 %v436, 0.0
          %v459 = vmax.f32 %v441, 0.0
          %v460 = vmax.f32 %v446, 0.0
          %v461 = vmax.f32 %v451, 0.0
          %v462 = vld [vmem:[#allocation8] sm:$0xff]
          %v463 = vld [vmem:[#allocation8 + $0x8] sm:$0xff]
          %v464 = vld [vmem:[#allocation8 + $0x10] sm:$0xff]
          %v465 = vld [vmem:[#allocation8 + $0x18] sm:$0xff]
          %v466 = vld [vmem:[#allocation8 + $0x20] sm:$0xff]
          %v467 = vld [vmem:[#allocation8 + $0x28] sm:$0xff]
          %v468 = vld [vmem:[#allocation8 + $0x30] sm:$0xff]
          %v469 = vld [vmem:[#allocation8 + $0x38] sm:$0xff]
          %v470 = vld [vmem:[#allocation8 + $0x40] sm:$0xff]
          %v471 = vld [vmem:[#allocation8 + $0x48] sm:$0xff]
          %v472 = vld [vmem:[#allocation8 + $0x50] sm:$0xff]
          %v473 = vld [vmem:[#allocation8 + $0x58] sm:$0xff]
          %v474 = vld [vmem:[#allocation8 + $0x60] sm:$0xff]
          %v475 = vld [vmem:[#allocation8 + $0x68] sm:$0xff]
          %v476 = vld [vmem:[#allocation8 + $0x70] sm:$0xff]
          %v477 = vld [vmem:[#allocation8 + $0x78] sm:$0xff]
          %v478 = vld [vmem:[%s4] sm:$0x1]
          %v480 = vlaneseq
          %v481 = vshrl.u32 %v480, 7
          %v482 = vsub.s32 0, %v481
          %v483 = vrot.slane %v478, %v482
          %485 = vmatprep.subr.mxu0 0.0
          %486 = vmatpush1.msra.mxu0 %v462
          %487 = vmatprep.subr.mxu0 0.0
          %488 = vmatpush1.msra.mxu0 %v463
          %489 = vmatprep.subr.mxu0 0.0
          %490 = vmatpush1.msra.mxu0 %v464
          %491 = vmatprep.subr.mxu0 0.0
          %492 = vmatpush1.msra.mxu0 %v465
          %493 = vmatprep.subr.mxu0 0.0
          %494 = vmatpush1.msra.mxu0 %v466
          %495 = vmatprep.subr.mxu0 0.0
          %496 = vmatpush1.msra.mxu0 %v467
          %497 = vmatprep.subr.mxu0 0.0
          %498 = vmatpush1.msra.mxu0 %v468
          %499 = vmatprep.subr.mxu0 0.0
          %500 = vmatpush1.msra.mxu0 %v469
          %501 = vmatprep.subr.mxu0 0.0
          %502 = vmatpush1.msra.mxu0 %v470
          %503 = vmatprep.subr.mxu0 0.0
          %504 = vmatpush1.msra.mxu0 %v471
          %505 = vmatprep.subr.mxu0 0.0
          %506 = vmatpush1.msra.mxu0 %v472
          %507 = vmatprep.subr.mxu0 0.0
          %508 = vmatpush1.msra.mxu0 %v473
          %509 = vmatprep.subr.mxu0 0.0
          %510 = vmatpush1.msra.mxu0 %v474
          %511 = vmatprep.subr.mxu0 0.0
          %512 = vmatpush1.msra.mxu0 %v475
          %513 = vmatprep.subr.mxu0 0.0
          %514 = vmatpush1.msra.mxu0 %v476
          %515 = vmatprep.subr.mxu0 0.0
          %516 = vmatpush1.msra.mxu0 %v477
          %517 = vmatprep.subr.mxu0 0.0
          %518 = vmatpush1.msra.mxu0 0.0
          %519 = vmatprep.subr.mxu0 0.0
          %520 = vmatpush1.msra.mxu0 0.0
          %521 = vmatprep.subr.mxu0 0.0
          %522 = vmatpush1.msra.mxu0 0.0
          %523 = vmatprep.subr.mxu0 0.0
          %524 = vmatpush1.msra.mxu0 0.0
          %525 = vmatprep.subr.mxu0 0.0
          %526 = vmatpush1.msra.mxu0 0.0
          %527 = vmatprep.subr.mxu0 0.0
          %528 = vmatpush1.msra.mxu0 0.0
          %529 = vmatprep.subr.mxu0 0.0
          %530 = vmatpush1.msra.mxu0 0.0
          %531 = vmatprep.subr.mxu0 0.0
          %532 = vmatpush1.msra.mxu0 0.0
          %533 = vmatprep.subr.mxu0 0.0
          %534 = vmatpush1.msra.mxu0 0.0
          %535 = vmatprep.subr.mxu0 0.0
          %536 = vmatpush1.msra.mxu0 0.0
          %537 = vmatprep.subr.mxu0 0.0
          %538 = vmatpush1.msra.mxu0 0.0
          %539 = vmatprep.subr.mxu0 0.0
          %540 = vmatpush1.msra.mxu0 0.0
          %541 = vmatprep.subr.mxu0 0.0
          %542 = vmatpush1.msra.mxu0 0.0
          %543 = vmatprep.subr.mxu0 0.0
          %544 = vmatpush1.msra.mxu0 0.0
          %545 = vmatprep.subr.mxu0 0.0
          %546 = vmatpush1.msra.mxu0 0.0
          %547 = vmatprep.subr.mxu0 0.0
          %548 = vmatpush1.msra.mxu0 0.0
          %549 = vmatprep.mubr.f32.mxu0 0.0
          %550 = vmatmul.mubr.f32.gmra.mrb[0].mxu0 %v454
          %v551 = vpop.f32.mrb[0].mxu0
          %v552 = vadd.f32 %v483, %v551
          %v553 = vpop.f32.mrb[0].mxu0
          %554 = vmatprep.mubr.f32.mxu0 0.0
          %555 = vmatmul.mubr.f32.gmra.mrb[0].mxu0 %v455
          %v556 = vpop.f32.mrb[0].mxu0
          %v557 = vadd.f32 %v483, %v556
          %v558 = vpop.f32.mrb[0].mxu0
          %559 = vmatprep.mubr.f32.mxu0 0.0
          %560 = vmatmul.mubr.f32.gmra.mrb[0].mxu0 %v456
          %v561 = vpop.f32.mrb[0].mxu0
          %v562 = vadd.f32 %v483, %v561
          %v563 = vpop.f32.mrb[0].mxu0
          %564 = vmatprep.mubr.f32.mxu0 0.0
          %565 = vmatmul.mubr.f32.gmra.mrb[0].mxu0 %v457
          %v566 = vpop.f32.mrb[0].mxu0
          %v567 = vadd.f32 %v483, %v566
          %v568 = vpop.f32.mrb[0].mxu0
          %569 = vmatprep.mubr.f32.mxu0 0.0
          %570 = vmatmul.mubr.f32.gmra.mrb[0].mxu0 %v458
          %v571 = vpop.f32.mrb[0].mxu0
          %v572 = vadd.f32 %v483, %v571
          %v573 = vpop.f32.mrb[0].mxu0
          %574 = vmatprep.mubr.f32.mxu0 0.0
          %575 = vmatmul.mubr.f32.gmra.mrb[0].mxu0 %v459
          %v576 = vpop.f32.mrb[0].mxu0
          %v577 = vadd.f32 %v483, %v576
          %v578 = vpop.f32.mrb[0].mxu0
          %579 = vmatprep.mubr.f32.mxu0 0.0
          %580 = vmatmul.mubr.f32.gmra.mrb[0].mxu0 %v460
          %v581 = vpop.f32.mrb[0].mxu0
          %v582 = vadd.f32 %v483, %v581
          %v583 = vpop.f32.mrb[0].mxu0
          %584 = vmatprep.mubr.f32.mxu0 0.0
          %585 = vmatmul.mubr.f32.gmra.mrb[0].mxu0 %v461
          %v586 = vpop.f32.mrb[0].mxu0
          %v587 = vadd.f32 %v483, %v586
          %v588 = vpop.f32.mrb[0].mxu0
          %589 = vdwg.mxu0
          %590 = vst [vmem:[#allocation2] sm:$0xff] %v552
          %591 = vst [vmem:[#allocation2 + $0x8] sm:$0xff] %v557
          %592 = vst [vmem:[#allocation2 + $0x10] sm:$0xff] %v562
          %593 = vst [vmem:[#allocation2 + $0x18] sm:$0xff] %v567
          %594 = vst [vmem:[#allocation2 + $0x20] sm:$0xff] %v572
          %595 = vst [vmem:[#allocation2 + $0x28] sm:$0xff] %v577
          %596 = vst [vmem:[#allocation2 + $0x30] sm:$0xff] %v582
          %597 = vst [vmem:[#allocation2 + $0x38] sm:$0xff] %v587
        $region64: #{tpu_custom_call.1} parent=43 // pred_fallthru
          _
        %v598 = vld [vmem:[%s285] sm:$0xff]
        %v599 = vld [vmem:[%s285 + $0x8] sm:$0xff]
        %v600 = vld [vmem:[%s285 + $0x10] sm:$0xff]
        %v601 = vld [vmem:[%s285 + $0x18] sm:$0xff]
        %v602 = vld [vmem:[%s285 + $0x20] sm:$0xff]
        %v603 = vld [vmem:[%s285 + $0x28] sm:$0xff]
        %v604 = vld [vmem:[%s285 + $0x30] sm:$0xff]
        %v605 = vld [vmem:[%s285 + $0x38] sm:$0xff]
        %v606 = vld [vmem:[#allocation2] sm:$0xff]
        %v607 = vld [vmem:[#allocation2 + $0x8] sm:$0xff]
        %v608 = vld [vmem:[#allocation2 + $0x10] sm:$0xff]
        %v609 = vld [vmem:[#allocation2 + $0x18] sm:$0xff]
        %v610 = vld [vmem:[#allocation2 + $0x20] sm:$0xff]
        %v611 = vld [vmem:[#allocation2 + $0x28] sm:$0xff]
        %v612 = vld [vmem:[#allocation2 + $0x30] sm:$0xff]
        %v613 = vld [vmem:[#allocation2 + $0x38] sm:$0xff]
        %vm614 = vcmask 523264
        %v616 = vsel %vm614, %v598, 0
        %v619 = vsel %vm614, %v599, 0
        %v622 = vsel %vm614, %v600, 0
        %v625 = vsel %vm614, %v601, 0
        %v628 = vsel %vm614, %v602, 0
        %v631 = vsel %vm614, %v603, 0
        %v634 = vsel %vm614, %v604, 0
        %v637 = vsel %vm614, %v605, 0
        %639 = vmatprep.subr.mxu0 0.0
        %640 = vmatpush1.msra.mxu0 %v606
        %641 = vmatprep.subr.mxu0 0.0
        %642 = vmatpush1.msra.mxu0 %v607
        %643 = vmatprep.subr.mxu0 0.0
        %644 = vmatpush1.msra.mxu0 %v608
        %645 = vmatprep.subr.mxu0 0.0
        %646 = vmatpush1.msra.mxu0 %v609
        %647 = vmatprep.subr.mxu0 0.0
        %648 = vmatpush1.msra.mxu0 %v610
        %649 = vmatprep.subr.mxu0 0.0
        %650 = vmatpush1.msra.mxu0 %v611
        %651 = vmatprep.subr.mxu0 0.0
        %652 = vmatpush1.msra.mxu0 %v612
        %653 = vmatprep.subr.mxu0 0.0
        %654 = vmatpush1.msra.mxu0 %v613
        %655 = vmatprep.subr.mxu0 0.0
        %656 = vmatpush1.msra.mxu0 0.0
        %657 = vmatprep.subr.mxu0 0.0
        %658 = vmatpush1.msra.mxu0 0.0
        %659 = vmatprep.subr.mxu0 0.0
        %660 = vmatpush1.msra.mxu0 0.0
        %661 = vmatprep.subr.mxu0 0.0
        %662 = vmatpush1.msra.mxu0 0.0
        %663 = vmatprep.subr.mxu0 0.0
        %664 = vmatpush1.msra.mxu0 0.0
        %665 = vmatprep.subr.mxu0 0.0
        %666 = vmatpush1.msra.mxu0 0.0
        %667 = vmatprep.subr.mxu0 0.0
        %668 = vmatpush1.msra.mxu0 0.0
        %669 = vmatprep.subr.mxu0 0.0
        %670 = vmatpush1.msra.mxu0 0.0
        %671 = vmatprep.subr.mxu0 0.0
        %672 = vmatpush1.msra.mxu0 0.0
        %673 = vmatprep.subr.mxu0 0.0
        %674 = vmatpush1.msra.mxu0 0.0
        %675 = vmatprep.subr.mxu0 0.0
        %676 = vmatpush1.msra.mxu0 0.0
        %677 = vmatprep.subr.mxu0 0.0
        %678 = vmatpush1.msra.mxu0 0.0
        %679 = vmatprep.subr.mxu0 0.0
        %680 = vmatpush1.msra.mxu0 0.0
        %681 = vmatprep.subr.mxu0 0.0
        %682 = vmatpush1.msra.mxu0 0.0
        %683 = vmatprep.subr.mxu0 0.0
        %684 = vmatpush1.msra.mxu0 0.0
        %685 = vmatprep.subr.mxu0 0.0
        %686 = vmatpush1.msra.mxu0 0.0
        %687 = vmatprep.subr.mxu0 0.0
        %688 = vmatpush1.msra.mxu0 0.0
        %689 = vmatprep.subr.mxu0 0.0
        %690 = vmatpush1.msra.mxu0 0.0
        %691 = vmatprep.subr.mxu0 0.0
        %692 = vmatpush1.msra.mxu0 0.0
        %693 = vmatprep.subr.mxu0 0.0
        %694 = vmatpush1.msra.mxu0 0.0
        %695 = vmatprep.subr.mxu0 0.0
        %696 = vmatpush1.msra.mxu0 0.0
        %697 = vmatprep.subr.mxu0 0.0
        %698 = vmatpush1.msra.mxu0 0.0
        %699 = vmatprep.subr.mxu0 0.0
        %700 = vmatpush1.msra.mxu0 0.0
        %701 = vmatprep.subr.mxu0 0.0
        %702 = vmatpush1.msra.mxu0 0.0
        %703 = vmatprep.mubr.f32.mxu0 0.0
        %704 = vmatmul.mubr.f32.gmra.mrb[0].mxu0 %v616
        %v705 = vpop.f32.mrb[0].mxu0
        %v706 = vadd.f32 0.0, %v705
        %v707 = vpop.f32.mrb[0].mxu0
        %708 = vmatprep.mubr.f32.mxu0 0.0
        %709 = vmatmul.mubr.f32.gmra.mrb[0].mxu0 %v619
        %v710 = vpop.f32.mrb[0].mxu0
        %v711 = vadd.f32 0.0, %v710
        %v712 = vpop.f32.mrb[0].mxu0
        %713 = vmatprep.mubr.f32.mxu0 0.0
        %714 = vmatmul.mubr.f32.gmra.mrb[0].mxu0 %v622
        %v715 = vpop.f32.mrb[0].mxu0
        %v716 = vadd.f32 0.0, %v715
        %v717 = vpop.f32.mrb[0].mxu0
        %718 = vmatprep.mubr.f32.mxu0 0.0
        %719 = vmatmul.mubr.f32.gmra.mrb[0].mxu0 %v625
        %v720 = vpop.f32.mrb[0].mxu0
        %v721 = vadd.f32 0.0, %v720
        %v722 = vpop.f32.mrb[0].mxu0
        %723 = vmatprep.mubr.f32.mxu0 0.0
        %724 = vmatmul.mubr.f32.gmra.mrb[0].mxu0 %v628
        %v725 = vpop.f32.mrb[0].mxu0
        %v726 = vadd.f32 0.0, %v725
        %v727 = vpop.f32.mrb[0].mxu0
        %728 = vmatprep.mubr.f32.mxu0 0.0
        %729 = vmatmul.mubr.f32.gmra.mrb[0].mxu0 %v631
        %v730 = vpop.f32.mrb[0].mxu0
        %v731 = vadd.f32 0.0, %v730
        %v732 = vpop.f32.mrb[0].mxu0
        %733 = vmatprep.mubr.f32.mxu0 0.0
        %734 = vmatmul.mubr.f32.gmra.mrb[0].mxu0 %v634
        %v735 = vpop.f32.mrb[0].mxu0
        %v736 = vadd.f32 0.0, %v735
        %v737 = vpop.f32.mrb[0].mxu0
        %738 = vmatprep.mubr.f32.mxu0 0.0
        %739 = vmatmul.mubr.f32.gmra.mrb[0].mxu0 %v637
        %v740 = vpop.f32.mrb[0].mxu0
        %v741 = vadd.f32 0.0, %v740
        %v742 = vpop.f32.mrb[0].mxu0
        %743 = vdwg.mxu0
        %v744 = vmul.f32 %v706, 0.9
        %v745 = vmul.f32 %v711, 0.9
        %v746 = vmul.f32 %v716, 0.9
        %v747 = vmul.f32 %v721, 0.9
        %v748 = vmul.f32 %v726, 0.9
        %v749 = vmul.f32 %v731, 0.9
        %v750 = vmul.f32 %v736, 0.9
        %v751 = vmul.f32 %v741, 0.9
        %v752 = vmul.f32 %v606, 0.1
        %v753 = vmul.f32 %v607, 0.1
        %v754 = vmul.f32 %v608, 0.1
        %v755 = vmul.f32 %v609, 0.1
        %v756 = vmul.f32 %v610, 0.1
        %v757 = vmul.f32 %v611, 0.1
        %v758 = vmul.f32 %v612, 0.1
        %v759 = vmul.f32 %v613, 0.1
        %v760 = vadd.f32 %v744, %v752
        %v761 = vadd.f32 %v745, %v753
        %v762 = vadd.f32 %v746, %v754
        %v763 = vadd.f32 %v747, %v755
        %v764 = vadd.f32 %v748, %v756
        %v765 = vadd.f32 %v749, %v757
        %v766 = vadd.f32 %v750, %v758
        %v767 = vadd.f32 %v751, %v759
        %768 = vmatprep.subr.mxu0 0.0
        %769 = vmatpush1.msra.mxu0 %v760
        %770 = vmatprep.subr.mxu0 0.0
        %771 = vmatpush1.msra.mxu0 %v761
        %772 = vmatprep.subr.mxu0 0.0
        %773 = vmatpush1.msra.mxu0 %v762
        %774 = vmatprep.subr.mxu0 0.0
        %775 = vmatpush1.msra.mxu0 %v763
        %776 = vmatprep.subr.mxu0 0.0
        %777 = vmatpush1.msra.mxu0 %v764
        %778 = vmatprep.subr.mxu0 0.0
        %779 = vmatpush1.msra.mxu0 %v765
        %780 = vmatprep.subr.mxu0 0.0
        %781 = vmatpush1.msra.mxu0 %v766
        %782 = vmatprep.subr.mxu0 0.0
        %783 = vmatpush1.msra.mxu0 %v767
        %784 = vmatprep.subr.mxu0 0.0
        %785 = vmatpush1.msra.mxu0 0.0
        %786 = vmatprep.subr.mxu0 0.0
        %787 = vmatpush1.msra.mxu0 0.0
        %788 = vmatprep.subr.mxu0 0.0
        %789 = vmatpush1.msra.mxu0 0.0
        %790 = vmatprep.subr.mxu0 0.0
        %791 = vmatpush1.msra.mxu0 0.0
        %792 = vmatprep.subr.mxu0 0.0
        %793 = vmatpush1.msra.mxu0 0.0
        %794 = vmatprep.subr.mxu0 0.0
        %795 = vmatpush1.msra.mxu0 0.0
        %796 = vmatprep.subr.mxu0 0.0
        %797 = vmatpush1.msra.mxu0 0.0
        %798 = vmatprep.subr.mxu0 0.0
        %799 = vmatpush1.msra.mxu0 0.0
        %800 = vmatprep.subr.mxu0 0.0
        %801 = vmatpush1.msra.mxu0 0.0
        %802 = vmatprep.subr.mxu0 0.0
        %803 = vmatpush1.msra.mxu0 0.0
        %804 = vmatprep.subr.mxu0 0.0
        %805 = vmatpush1.msra.mxu0 0.0
        %806 = vmatprep.subr.mxu0 0.0
        %807 = vmatpush1.msra.mxu0 0.0
        %808 = vmatprep.subr.mxu0 0.0
        %809 = vmatpush1.msra.mxu0 0.0
        %810 = vmatprep.subr.mxu0 0.0
        %811 = vmatpush1.msra.mxu0 0.0
        %812 = vmatprep.subr.mxu0 0.0
        %813 = vmatpush1.msra.mxu0 0.0
        %814 = vmatprep.subr.mxu0 0.0
        %815 = vmatpush1.msra.mxu0 0.0
        %816 = vmatprep.subr.mxu0 0.0
        %817 = vmatpush1.msra.mxu0 0.0
        %818 = vmatprep.subr.mxu0 0.0
        %819 = vmatpush1.msra.mxu0 0.0
        %820 = vmatprep.subr.mxu0 0.0
        %821 = vmatpush1.msra.mxu0 0.0
        %822 = vmatprep.subr.mxu0 0.0
        %823 = vmatpush1.msra.mxu0 0.0
        %824 = vmatprep.subr.mxu0 0.0
        %825 = vmatpush1.msra.mxu0 0.0
        %826 = vmatprep.subr.mxu0 0.0
        %827 = vmatpush1.msra.mxu0 0.0
        %828 = vmatprep.subr.mxu0 0.0
        %829 = vmatpush1.msra.mxu0 0.0
        %830 = vmatprep.subr.mxu0 0.0
        %831 = vmatpush1.msra.mxu0 0.0
        %832 = vmatprep.mubr.f32.mxu0 0.0
        %833 = vmatmul.mubr.f32.gmra.mrb[0].mxu0 %v616
        %v834 = vpop.f32.mrb[0].mxu0
        %v835 = vadd.f32 0.0, %v834
        %v836 = vpop.f32.mrb[0].mxu0
        %837 = vmatprep.mubr.f32.mxu0 0.0
        %838 = vmatmul.mubr.f32.gmra.mrb[0].mxu0 %v619
        %v839 = vpop.f32.mrb[0].mxu0
        %v840 = vadd.f32 0.0, %v839
        %v841 = vpop.f32.mrb[0].mxu0
        %842 = vmatprep.mubr.f32.mxu0 0.0
        %843 = vmatmul.mubr.f32.gmra.mrb[0].mxu0 %v622
        %v844 = vpop.f32.mrb[0].mxu0
        %v845 = vadd.f32 0.0, %v844
        %v846 = vpop.f32.mrb[0].mxu0
        %847 = vmatprep.mubr.f32.mxu0 0.0
        %848 = vmatmul.mubr.f32.gmra.mrb[0].mxu0 %v625
        %v849 = vpop.f32.mrb[0].mxu0
        %v850 = vadd.f32 0.0, %v849
        %v851 = vpop.f32.mrb[0].mxu0
        %852 = vmatprep.mubr.f32.mxu0 0.0
        %853 = vmatmul.mubr.f32.gmra.mrb[0].mxu0 %v628
        %v854 = vpop.f32.mrb[0].mxu0
        %v855 = vadd.f32 0.0, %v854
        %v856 = vpop.f32.mrb[0].mxu0
        %857 = vmatprep.mubr.f32.mxu0 0.0
        %858 = vmatmul.mubr.f32.gmra.mrb[0].mxu0 %v631
        %v859 = vpop.f32.mrb[0].mxu0
        %v860 = vadd.f32 0.0, %v859
        %v861 = vpop.f32.mrb[0].mxu0
        %862 = vmatprep.mubr.f32.mxu0 0.0
        %863 = vmatmul.mubr.f32.gmra.mrb[0].mxu0 %v634
        %v864 = vpop.f32.mrb[0].mxu0
        %v865 = vadd.f32 0.0, %v864
        %v866 = vpop.f32.mrb[0].mxu0
        %867 = vmatprep.mubr.f32.mxu0 0.0
        %868 = vmatmul.mubr.f32.gmra.mrb[0].mxu0 %v637
        %v869 = vpop.f32.mrb[0].mxu0
        %v870 = vadd.f32 0.0, %v869
        %v871 = vpop.f32.mrb[0].mxu0
        %872 = vdwg.mxu0
        %v873 = vmul.f32 %v835, 0.9
        %v874 = vmul.f32 %v840, 0.9
        %v875 = vmul.f32 %v845, 0.9
        %v876 = vmul.f32 %v850, 0.9
        %v877 = vmul.f32 %v855, 0.9
        %v878 = vmul.f32 %v860, 0.9
        %v879 = vmul.f32 %v865, 0.9
        %v880 = vmul.f32 %v870, 0.9
        %v881 = vadd.f32 %v873, %v752
        %v882 = vadd.f32 %v874, %v753
        %v883 = vadd.f32 %v875, %v754
        %v884 = vadd.f32 %v876, %v755
        %v885 = vadd.f32 %v877, %v756
        %v886 = vadd.f32 %v878, %v757
        %v887 = vadd.f32 %v879, %v758
        %v888 = vadd.f32 %v880, %v759
        %v889 = vlaneseq
        %v890 = vand.u32 %v889, 127
        %vm891 = vcmp.lt.s32.totalorder %v890, 8
        %v892 = vsel %vm891, %v881, -1e+30
        %v893 = vsel %vm891, %v882, -1e+30
        %v894 = vsel %vm891, %v883, -1e+30
        %v895 = vsel %vm891, %v884, -1e+30
        %v896 = vsel %vm891, %v885, -1e+30
        %v897 = vsel %vm891, %v886, -1e+30
        %v898 = vsel %vm891, %v887, -1e+30
        %v899 = vsel %vm891, %v888, -1e+30
        %900 = vmax.xlane.f32.xlu0 %v892
        %v901 = vpop.xlane.xlu0 %900
        %902 = vmax.xlane.f32.xlu0 %v893
        %v903 = vpop.xlane.xlu0 %902
        %904 = vmax.xlane.f32.xlu0 %v894
        %v905 = vpop.xlane.xlu0 %904
        %906 = vmax.xlane.f32.xlu0 %v895
        %v907 = vpop.xlane.xlu0 %906
        %908 = vmax.xlane.f32.xlu0 %v896
        %v909 = vpop.xlane.xlu0 %908
        %910 = vmax.xlane.f32.xlu0 %v897
        %v911 = vpop.xlane.xlu0 %910
        %912 = vmax.xlane.f32.xlu0 %v898
        %v913 = vpop.xlane.xlu0 %912
        %914 = vmax.xlane.f32.xlu0 %v899
        %v915 = vpop.xlane.xlu0 %914
        %v916 = vsub.f32 %v892, %v901
        %v917 = vsub.f32 %v893, %v903
        %v918 = vsub.f32 %v894, %v905
        %v919 = vsub.f32 %v895, %v907
        %v920 = vsub.f32 %v896, %v909
        %v921 = vsub.f32 %v897, %v911
        %v922 = vsub.f32 %v898, %v913
        %v923 = vsub.f32 %v899, %v915
        %v924 = vmul.f32 %v916, 1.442695
        %v925 = vpow.pop %v924
        %v926 = vmul.f32 %v917, 1.442695
        %v927 = vpow.pop %v926
        %v928 = vmul.f32 %v918, 1.442695
        %v929 = vpow.pop %v928
        %v930 = vmul.f32 %v919, 1.442695
        %v931 = vpow.pop %v930
        %v932 = vmul.f32 %v920, 1.442695
        %v933 = vpow.pop %v932
        %v934 = vmul.f32 %v921, 1.442695
        %v935 = vpow.pop %v934
        %v936 = vmul.f32 %v922, 1.442695
        %v937 = vpow.pop %v936
        %v938 = vmul.f32 %v923, 1.442695
        %v939 = vpow.pop %v938
        %940 = vadd.xlane.f32.xlu0 %v925
        %v941 = vpop.xlane.xlu0 %940
        %942 = vadd.xlane.f32.xlu0 %v927
        %v943 = vpop.xlane.xlu0 %942
        %944 = vadd.xlane.f32.xlu0 %v929
        %v945 = vpop.xlane.xlu0 %944
        %946 = vadd.xlane.f32.xlu0 %v931
        %v947 = vpop.xlane.xlu0 %946
        %948 = vadd.xlane.f32.xlu0 %v933
        %v949 = vpop.xlane.xlu0 %948
        %950 = vadd.xlane.f32.xlu0 %v935
        %v951 = vpop.xlane.xlu0 %950
        %952 = vadd.xlane.f32.xlu0 %v937
        %v953 = vpop.xlane.xlu0 %952
        %954 = vadd.xlane.f32.xlu0 %v939
        %v955 = vpop.xlane.xlu0 %954
        %v956 = vlog2.pop %v941
        %v957 = vmul.f32 %v956, 0.6931472
        %v958 = vlog2.pop %v943
        %v959 = vmul.f32 %v958, 0.6931472
        %v960 = vlog2.pop %v945
        %v961 = vmul.f32 %v960, 0.6931472
        %v962 = vlog2.pop %v947
        %v963 = vmul.f32 %v962, 0.6931472
        %v964 = vlog2.pop %v949
        %v965 = vmul.f32 %v964, 0.6931472
        %v966 = vlog2.pop %v951
        %v967 = vmul.f32 %v966, 0.6931472
        %v968 = vlog2.pop %v953
        %v969 = vmul.f32 %v968, 0.6931472
        %v970 = vlog2.pop %v955
        %v971 = vmul.f32 %v970, 0.6931472
        %v972 = vadd.f32 %v957, %v901
        %v973 = vadd.f32 %v959, %v903
        %v974 = vadd.f32 %v961, %v905
        %v975 = vadd.f32 %v963, %v907
        %v976 = vadd.f32 %v965, %v909
        %v977 = vadd.f32 %v967, %v911
        %v978 = vadd.f32 %v969, %v913
        %v979 = vadd.f32 %v971, %v915
        %v980 = vsub.f32 %v892, %v972
        %v981 = vsub.f32 %v893, %v973
        %v982 = vsub.f32 %v894, %v974
        %v983 = vsub.f32 %v895, %v975
        %v984 = vsub.f32 %v896, %v976
        %v985 = vsub.f32 %v897, %v977
        %v986 = vsub.f32 %v898, %v978
        %v987 = vsub.f32 %v899, %v979
        %988 = vst [vmem:[%s313] sm:$0xff] %v980
        %989 = vst [vmem:[%s313 + $0x8] sm:$0xff] %v981
        %990 = vst [vmem:[%s313 + $0x10] sm:$0xff] %v982
        %991 = vst [vmem:[%s313 + $0x18] sm:$0xff] %v983
        %992 = vst [vmem:[%s313 + $0x20] sm:$0xff] %v984
        %993 = vst [vmem:[%s313 + $0x28] sm:$0xff] %v985
        %994 = vst [vmem:[%s313 + $0x30] sm:$0xff] %v986
        %995 = vst [vmem:[%s313 + $0x38] sm:$0xff] %v987
        %s996 = sand.u32 %s164, 1
        %s997 = scalar_lea.sflag [#allocation5], %s996
        %s998 = sand.u32 %s164, 1
        %s999 = smul.addr %s998, 64
        %s1000 = scalar_lea.vmem [#allocation11], %s999
        // Predicated region
        $region65: #{tpu_custom_call.1} parent=43 // pred_check
          %p1001 = pneg %p174
        $region66: #{tpu_custom_call.1} parent=43 // pred_check_branch
          %1003 = sbr.rel (%p1001) target = $region68
        $region67: #{tpu_custom_call.1} parent=43 // pred_region
          %s1005 = ssub.s32 1024, 1024
          %1006 = vsyncadd %s997, %s1005
          %s1007 = smul.addr %s25, 8
          %s1008 = smul.addr %s1007, 128
          %s1009 = scalar_lea.hbm %s6, %s1008
          %s1010 = sshll.u32 %s1000, 4
          %s1011 = int_to_ptr.vmem [resolvable:$true] %s1010
          %1016 = dma.vmem_to_hbm [thread:$0]  %s1011, 1024, %s1009, %s997, 128, 128, 8
        $region68: #{tpu_custom_call.1} parent=43 // pred_fallthru
          _
      $region44: #{tpu_custom_call.1} parent=5 // pred_fallthru
        _
      %p1017 = scmp.le.s32.totalorder 2, %s20
      // Predicated region
      $region69: #{tpu_custom_call.1} parent=5 // pred_check
        %p1018 = pneg %p1017
      $region70: #{tpu_custom_call.1} parent=5 // pred_check_branch
        %1020 = sbr.rel (%p1018) target = $region72
      $region71: #{tpu_custom_call.1} parent=5 // pred_region
        %s1021 = ssub.s32 %s20, 2
        // Predicated region
        $region73: #{tpu_custom_call.1} parent=71 // pred_check
          %p1022 = pneg %p180
        $region74: #{tpu_custom_call.1} parent=71 // pred_check_branch
          %1024 = sbr.rel (%p1022) target = $region76
        $region75: #{tpu_custom_call.1} parent=71 // pred_region
          %s1025 = sand.u32 %s165, 1
          %s1026 = scalar_lea.sflag [#allocation5], %s1025
          %s1027 = sand.u32 %s165, 1
          %s1028 = smul.addr %s1027, 64
          %s1029 = scalar_lea.vmem [#allocation11], %s1028
          %1030 = dma.done %s1026, 1024
        $region76: #{tpu_custom_call.1} parent=71 // pred_fallthru
          _
      $region72: #{tpu_custom_call.1} parent=5 // pred_fallthru
        _
    $region6: #{tpu_custom_call.1} parent=1 // loop_footer
      %s24 = sadd.s32 1, %s20
    $region7: #{tpu_custom_call.1} parent=1 // loop_footer_branch
      %19 = sbr.rel target = $region3
    $region8: #{tpu_custom_call.1} parent=1 // loop_exit
      _
    %1031 = vsyncpa [#allocation4], 1
    %s1032 = scalar_lea.sflag [#allocation4], 1
    %1033 = vsyncpa %s1032, 1
    %1034 = vsyncpa [#allocation7], 1
    %1035 = vsyncpa [#allocation10], 1
    %s1036 = scalar_lea.sflag [#allocation10], 1
    %1037 = vsyncpa %s1036, 1
    %1038 = vsyncpa [#allocation5], 1
    %s1039 = scalar_lea.sflag [#allocation5], 1
    %1040 = vsyncpa %s1039, 1

</llo_original>
